<compile_context>
chip_gen: v5e
topology: v5e:2x2
jax: 0.10.0
libtpu: 0.0.40
codegen_flags: <defaults>
</compile_context>

<pallas_src>
import functools
import math

import jax
import jax.numpy as jnp
from jax.experimental import pallas as pl
from jax.experimental.pallas import tpu as pltpu


def _rp_kernel(x_ref, w1_ref, b1_ref, w2_ref, b2_ref, w3_ref, b3_ref, o_ref):
    # x_ref: (2C, T) bf16 block -- features on sublanes, tokens (N*H*W) on lanes.
    x = x_ref[...]                                           # (2C, T) bf16

    # encoder: z = relu(W1 @ x + b1)        W1: (C, 2C) bf16, b1: (C, 1) f32
    z = jnp.dot(w1_ref[...], x, preferred_element_type=jnp.float32)
    z = jnp.maximum(z + b1_ref[...], 0.0)                    # (C, T) f32

    # meta_learner: h = relu(W2 @ z + b2);  mw = W3 @ h + b3
    h = jnp.dot(w2_ref[...], z.astype(jnp.bfloat16),
                preferred_element_type=jnp.float32)
    h = jnp.maximum(h + b2_ref[...], 0.0).astype(jnp.bfloat16)   # (Hd, T)
    mw = jnp.dot(w3_ref[...], h, preferred_element_type=jnp.float32)
    mw = mw + b3_ref[...]                                    # (C, T) f32

    # meta_weight.mul(z).sum(feature axis): offload the sublane reduce to the
    # MXU via a (1,C)x(C,T) ones-vector matmul (bf16 product, f32 accumulate).
    prod = (mw * z).astype(jnp.bfloat16)                     # (C, T) bf16
    ones_row = jnp.ones((1, prod.shape[0]), jnp.bfloat16)    # (1, C) constant
    s = jnp.dot(ones_row, prod, preferred_element_type=jnp.float32)  # (1, T)

    # sigmoid; lane-dense store.
    o_ref[...] = jax.nn.sigmoid(s).astype(o_ref.dtype)


def rp_network_pallas(x_nchw, params, *, tile_tokens=8192):
    """x_nchw: (N, 2*C_in, H, W) float (f32 or bf16). Returns (N, 1, H, W) f32.

    params are in PyTorch nn.Linear layout:
      w1 (C, 2C), b1 (C, 1), w2 (Hd, C), b2 (Hd, 1), w3 (C, Hd), b3 (C, 1).
    """
    w1, b1, w2, b2, w3, b3 = params
    n, c2, hh, ww = x_nchw.shape
    c = w1.shape[0]              # in_channels
    hid = w2.shape[0]            # int(in_channels * r)
    assert c2 == 2 * c, "input channel dim must be 2 * in_channels"

    hw = hh * ww
    total = n * hw               # batch folded into the token axis

    # Fold batch into tokens: (N, 2C, H*W) -> (2C, N*H*W).  The f32->bf16
    # convert rides the same XLA transpose/copy pass (no standalone cast pass).
    x_tok = jnp.transpose(x_nchw.reshape(n, c2, hw), (1, 0, 2))
    x_tok = x_tok.reshape(c2, total).astype(jnp.bfloat16)

    # Token-tile size along the lane axis.
    #  * multiples of 128 (lane-dense; ragged last block is masked, and since
    #    the contraction is over sublanes/features, garbage lanes never
    #    contaminate valid ones),
    #  * capped at 8192 so double-buffered blocks + f32 intermediates stay
    #    within v7x's 64 MiB VMEM,
    #  * >= 2 grid steps whenever possible so v7x's two TensorCores get work.
    max_tile = max(128, (min(int(tile_tokens), 8192) // 128) * 128)
    if total <= 128:
        t_tile = total                                    # single full block
    else:
        two_step = max(128, ((total // 2) // 128) * 128)  # >=2 steps for v7x
        t_tile = min(max_tile, two_step)
    grid = (pl.cdiv(total, t_tile),)

    # Ship matmul weights as bf16 (tiny arrays); biases stay f32.
    w1b = w1.astype(jnp.bfloat16)
    w2b = w2.astype(jnp.bfloat16)
    w3b = w3.astype(jnp.bfloat16)

    out = pl.pallas_call(
        _rp_kernel,
        out_shape=jax.ShapeDtypeStruct((1, total), jnp.float32),
        grid_spec=pltpu.PrefetchScalarGridSpec(
            num_scalar_prefetch=0,
            grid=grid,
            in_specs=[
                pl.BlockSpec((c2, t_tile), lambda j: (0, j)),   # x (2C, T-tile)
                # Weight / bias index_maps are grid-invariant -> VMEM-resident,
                # never re-fetched per step.
                pl.BlockSpec((c, c2), lambda j: (0, 0)),        # W1 (C, 2C)
                pl.BlockSpec((c, 1), lambda j: (0, 0)),         # b1 (C, 1)
                pl.BlockSpec((hid, c), lambda j: (0, 0)),       # W2 (Hd, C)
                pl.BlockSpec((hid, 1), lambda j: (0, 0)),       # b2 (Hd, 1)
                pl.BlockSpec((c, hid), lambda j: (0, 0)),       # W3 (C, Hd)
                pl.BlockSpec((c, 1), lambda j: (0, 0)),         # b3 (C, 1)
            ],
            out_specs=pl.BlockSpec((1, t_tile), lambda j: (0, j)),
        ),
        compiler_params=pltpu.CompilerParams(
            dimension_semantics=("parallel",),
            # Headroom for 8192-token tiles on v5e's 16 MiB scoped default;
            # matches v6e/v7x defaults, well under every chip's physical VMEM.
            vmem_limit_bytes=32 << 20,
        ),
    )(x_tok, w1b, b1, w2b, b2, w3b, b3)

    # Free reshape: (1, N*H*W) -> (N, 1, H, W) (token order is b*HW + h*W + w).
    return out.reshape(n, 1, hh, ww)


def init_params(key, in_channels=64, r=0.5, dtype=jnp.float32):
    """Deterministic synthetic parameters, PyTorch nn.Linear layout (out, in)."""
    hid = int(in_channels * r)
    c2 = 2 * in_channels
    keys = jax.random.split(key, 6)

    def lin(kw, kb, fan_in, fan_out):
        bound = 1.0 / math.sqrt(fan_in)
        w = jax.random.uniform(kw, (fan_out, fan_in), dtype, -bound, bound)
        b = jax.random.uniform(kb, (fan_out, 1), dtype, -bound, bound)
        return w, b

    w1, b1 = lin(keys[0], keys[1], c2, in_channels)
    w2, b2 = lin(keys[2], keys[3], in_channels, hid)
    w3, b3 = lin(keys[4], keys[5], hid, in_channels)
    return (w1, b1, w2, b2, w3, b3)


def _reference(x_nchw, params):
    """Pure-JAX f32 reference (mirrors the PyTorch forward)."""
    w1, b1, w2, b2, w3, b3 = params
    x = jnp.transpose(x_nchw, (0, 2, 3, 1))                 # NHWC
    z = jax.nn.relu(x @ w1.T + b1[:, 0])
    h = jax.nn.relu(z @ w2.T + b2[:, 0])
    mw = h @ w3.T + b3[:, 0]
    out = jnp.sum(mw * z, axis=-1, keepdims=True)           # (N,H,W,1)
    out = jnp.transpose(out, (0, 3, 1, 2))                  # (N,1,H,W)
    return jax.nn.sigmoid(out)


if __name__ == "__main__":
    in_channels = 64      # module default
    r = 0.5
    N, H, W = 2, 8, 8     # small spatial grid; C2 = 2*in_channels = 128

    key = jax.random.PRNGKey(0)
    kx, kp = jax.random.split(key)
    x = jax.random.normal(kx, (N, 2 * in_channels, H, W), jnp.float32)
    params = init_params(kp, in_channels=in_channels, r=r)

    fn = jax.jit(functools.partial(rp_network_pallas, tile_tokens=8192))
    out = jax.block_until_ready(fn(x, params))

    ref = _reference(x, params)
    assert out.shape == (N, 1, H, W), out.shape
    max_err = float(jnp.max(jnp.abs(out - ref)))
    # bf16 MXU matmuls (and bf16 mw*z product) vs f32 reference -> relaxed tol.
    assert max_err < 3e-2, max_err

    print("KERNEL_OK")
</pallas_src>

<mosaic_0001>
module attributes {stable_mosaic.version = 11 : i64} {
  func.func @_rp_kernel(%arg0: i32, %arg1: memref<128x128xbf16, #tpu.memory_space<vmem>>, %arg2: memref<64x128xbf16, #tpu.memory_space<vmem>>, %arg3: memref<64x1xf32, #tpu.memory_space<vmem>>, %arg4: memref<32x64xbf16, #tpu.memory_space<vmem>>, %arg5: memref<32x1xf32, #tpu.memory_space<vmem>>, %arg6: memref<64x32xbf16, #tpu.memory_space<vmem>>, %arg7: memref<64x1xf32, #tpu.memory_space<vmem>>, %arg8: memref<1x128xf32, #tpu.memory_space<vmem>>) attributes {dimension_semantics = [#tpu.dimension_semantics<parallel>], iteration_bounds = array<i64: 1>, scalar_prefetch = 0 : i64, scratch_operands = 0 : i64, tpu.core_type = #tpu.core_type<tc>, window_params = [{transform_indices = @transform_0, window_bounds = array<i64: 128, 128>}, {pipeline_mode = #tpu.pipeline_mode<synchronous>, transform_indices = @transform_1, window_bounds = array<i64: 64, 128>}, {pipeline_mode = #tpu.pipeline_mode<synchronous>, transform_indices = @transform_2, window_bounds = array<i64: 64, 1>}, {pipeline_mode = #tpu.pipeline_mode<synchronous>, transform_indices = @transform_3, window_bounds = array<i64: 32, 64>}, {pipeline_mode = #tpu.pipeline_mode<synchronous>, transform_indices = @transform_4, window_bounds = array<i64: 32, 1>}, {pipeline_mode = #tpu.pipeline_mode<synchronous>, transform_indices = @transform_5, window_bounds = array<i64: 64, 32>}, {pipeline_mode = #tpu.pipeline_mode<synchronous>, transform_indices = @transform_6, window_bounds = array<i64: 64, 1>}, {transform_indices = @transform_7, window_bounds = array<i64: 1, 128>}]} {
    %c0 = arith.constant 0 : index
    %c0_0 = arith.constant 0 : index
    %0 = vector.load %arg1[%c0, %c0_0] : memref<128x128xbf16, #tpu.memory_space<vmem>>, vector<128x128xbf16>
    %c0_1 = arith.constant 0 : index
    %c0_2 = arith.constant 0 : index
    %1 = vector.load %arg2[%c0_1, %c0_2] : memref<64x128xbf16, #tpu.memory_space<vmem>>, vector<64x128xbf16>
    %cst = arith.constant dense<0.000000e+00> : vector<64x128xf32>
    %2 = tpu.matmul %1, %0, %cst {dimension_numbers = #tpu.dot_dimension_numbers<[1], [0], [0], [1], [0, 0, 1, 1], [], []>} : vector<64x128xbf16>, vector<128x128xbf16>, vector<64x128xf32> -> vector<64x128xf32>
    %c0_3 = arith.constant 0 : index
    %c0_4 = arith.constant 0 : index
    %3 = vector.load %arg3[%c0_3, %c0_4] : memref<64x1xf32, #tpu.memory_space<vmem>>, vector<64x1xf32>
    %4 = vector.broadcast %3 : vector<64x1xf32> to vector<64x128xf32>
    %5 = arith.addf %2, %4 : vector<64x128xf32>
    %cst_5 = arith.constant 0.000000e+00 : f32
    %6 = vector.broadcast %cst_5 : f32 to vector<64x128xf32>
    %7 = arith.maximumf %5, %6 : vector<64x128xf32>
    %c0_6 = arith.constant 0 : index
    %c0_7 = arith.constant 0 : index
    %8 = vector.load %arg4[%c0_6, %c0_7] : memref<32x64xbf16, #tpu.memory_space<vmem>>, vector<32x64xbf16>
    %9 = arith.truncf %7 : vector<64x128xf32> to vector<64x128xbf16>
    %cst_8 = arith.constant dense<0.000000e+00> : vector<32x128xf32>
    %10 = tpu.matmul %8, %9, %cst_8 {dimension_numbers = #tpu.dot_dimension_numbers<[1], [0], [0], [1], [0, 0, 1, 1], [], []>} : vector<32x64xbf16>, vector<64x128xbf16>, vector<32x128xf32> -> vector<32x128xf32>
    %c0_9 = arith.constant 0 : index
    %c0_10 = arith.constant 0 : index
    %11 = vector.load %arg5[%c0_9, %c0_10] : memref<32x1xf32, #tpu.memory_space<vmem>>, vector<32x1xf32>
    %12 = vector.broadcast %11 : vector<32x1xf32> to vector<32x128xf32>
    %13 = arith.addf %10, %12 : vector<32x128xf32>
    %cst_11 = arith.constant 0.000000e+00 : f32
    %14 = vector.broadcast %cst_11 : f32 to vector<32x128xf32>
    %15 = arith.maximumf %13, %14 : vector<32x128xf32>
    %16 = arith.truncf %15 : vector<32x128xf32> to vector<32x128xbf16>
    %c0_12 = arith.constant 0 : index
    %c0_13 = arith.constant 0 : index
    %17 = vector.load %arg6[%c0_12, %c0_13] : memref<64x32xbf16, #tpu.memory_space<vmem>>, vector<64x32xbf16>
    %cst_14 = arith.constant dense<0.000000e+00> : vector<64x128xf32>
    %18 = tpu.matmul %17, %16, %cst_14 {dimension_numbers = #tpu.dot_dimension_numbers<[1], [0], [0], [1], [0, 0, 1, 1], [], []>} : vector<64x32xbf16>, vector<32x128xbf16>, vector<64x128xf32> -> vector<64x128xf32>
    %c0_15 = arith.constant 0 : index
    %c0_16 = arith.constant 0 : index
    %19 = vector.load %arg7[%c0_15, %c0_16] : memref<64x1xf32, #tpu.memory_space<vmem>>, vector<64x1xf32>
    %20 = vector.broadcast %19 : vector<64x1xf32> to vector<64x128xf32>
    %21 = arith.addf %18, %20 : vector<64x128xf32>
    %22 = arith.mulf %21, %7 : vector<64x128xf32>
    %23 = arith.truncf %22 : vector<64x128xf32> to vector<64x128xbf16>
    %cst_17 = arith.constant 1.000000e+00 : bf16
    %24 = vector.broadcast %cst_17 : bf16 to vector<1x64xbf16>
    %cst_18 = arith.constant dense<0.000000e+00> : vector<1x128xf32>
    %25 = tpu.matmul %24, %23, %cst_18 {dimension_numbers = #tpu.dot_dimension_numbers<[1], [0], [0], [1], [0, 0, 1, 1], [], []>} : vector<1x64xbf16>, vector<64x128xbf16>, vector<1x128xf32> -> vector<1x128xf32>
    %26 = arith.negf %25 : vector<1x128xf32>
    %27 = math.exp %26 : vector<1x128xf32>
    %cst_19 = arith.constant 1.000000e+00 : f32
    %28 = vector.broadcast %cst_19 : f32 to vector<1x128xf32>
    %29 = arith.addf %28, %27 : vector<1x128xf32>
    %30 = arith.divf %28, %29 : vector<1x128xf32>
    %c0_20 = arith.constant 0 : index
    %c0_21 = arith.constant 0 : index
    %31 = vector.load %arg8[%c0_20, %c0_21] : memref<1x128xf32, #tpu.memory_space<vmem>>, vector<1x128xf32>
    tpu.vector_store %arg8[%c0_20, %c0_21], %30 {strides = array<i32>} : memref<1x128xf32, #tpu.memory_space<vmem>>, vector<1x128xf32>,
    return
  }
  func.func @transform_0(%arg0: i32) -> (i32, i32) {
    %c0_i32 = arith.constant 0 : i32
    %c0_i32_0 = arith.constant 0 : i32
    return %c0_i32, %arg0 : i32, i32
  }
  func.func @transform_1(%arg0: i32) -> (i32, i32) {
    %c0_i32 = arith.constant 0 : i32
    %c0_i32_0 = arith.constant 0 : i32
    %c0_i32_1 = arith.constant 0 : i32
    return %c0_i32, %c0_i32_0 : i32, i32
  }
  func.func @transform_2(%arg0: i32) -> (i32, i32) {
    %c0_i32 = arith.constant 0 : i32
    %c0_i32_0 = arith.constant 0 : i32
    %c0_i32_1 = arith.constant 0 : i32
    return %c0_i32, %c0_i32_0 : i32, i32
  }
  func.func @transform_3(%arg0: i32) -> (i32, i32) {
    %c0_i32 = arith.constant 0 : i32
    %c0_i32_0 = arith.constant 0 : i32
    %c0_i32_1 = arith.constant 0 : i32
    return %c0_i32, %c0_i32_0 : i32, i32
  }
  func.func @transform_4(%arg0: i32) -> (i32, i32) {
    %c0_i32 = arith.constant 0 : i32
    %c0_i32_0 = arith.constant 0 : i32
    %c0_i32_1 = arith.constant 0 : i32
    return %c0_i32, %c0_i32_0 : i32, i32
  }
  func.func @transform_5(%arg0: i32) -> (i32, i32) {
    %c0_i32 = arith.constant 0 : i32
    %c0_i32_0 = arith.constant 0 : i32
    %c0_i32_1 = arith.constant 0 : i32
    return %c0_i32, %c0_i32_0 : i32, i32
  }
  func.func @transform_6(%arg0: i32) -> (i32, i32) {
    %c0_i32 = arith.constant 0 : i32
    %c0_i32_0 = arith.constant 0 : i32
    %c0_i32_1 = arith.constant 0 : i32
    return %c0_i32, %c0_i32_0 : i32, i32
  }
  func.func @transform_7(%arg0: i32) -> (i32, i32) {
    %c0_i32 = arith.constant 0 : i32
    %c0_i32_0 = arith.constant 0 : i32
    return %c0_i32, %arg0 : i32, i32
  }
}

</mosaic_0001>

<llo_original>
// kernel: rp_network_pallas.1
$region0: #{rp_network_pallas.1}
  #allocation0 [shape = 'u32[]', space=smem, size = 0x4, offset = 0x4, fixed_abs, tag = 'smem constant byte address 0x4 - core index']
  #allocation1 [shape = 'u32[72,128]{1,0:T(1,128)}', space=vmem, size = 0x9000, scoped, tag = 'internal scratch']
  %s0 = inlined_call_operand.vmem [shape: bf16[128,128], index: 0, kind: input, shape index: {}]
  %s1 = inlined_call_operand.vmem [shape: bf16[64,128], index: 1, kind: input, shape index: {}]
  %s2 = inlined_call_operand.vmem [shape: f32[64,1], index: 2, kind: input, shape index: {}]
  %s3 = inlined_call_operand.vmem [shape: bf16[32,64], index: 3, kind: input, shape index: {}]
  %s4 = inlined_call_operand.vmem [shape: f32[32,1], index: 4, kind: input, shape index: {}]
  %s5 = inlined_call_operand.vmem [shape: bf16[64,32], index: 5, kind: input, shape index: {}]
  %s6 = inlined_call_operand.vmem [shape: f32[64,1], index: 6, kind: input, shape index: {}]
  %s7 = inlined_call_operand.vmem [shape: f32[1,128], index: 7, kind: output, shape index: {}]
  %s8 = sld [smem:[#allocation0]]
  $region38: #{rp_network_pallas.1} parent=0
    _
  %s10 = ssub.s32 1, %s8
  %s11 = scalar_select 0, %s10, %s8
  // Predicated region
  $region2: #{rp_network_pallas.1} parent=0 // pred_check
    _
  $region3: #{rp_network_pallas.1} parent=0 // pred_check_branch
    %13 = sbr.rel (0) target = $region5
  $region4: #{rp_network_pallas.1} parent=0 // pred_region
    _
  $region5: #{rp_network_pallas.1} parent=0 // pred_fallthru
    _
  // Predicated region
  $region6: #{rp_network_pallas.1} parent=0 // pred_check
    _
  $region7: #{rp_network_pallas.1} parent=0 // pred_check_branch
    %15 = sbr.rel (0) target = $region9
  $region8: #{rp_network_pallas.1} parent=0 // pred_region
    _
  $region9: #{rp_network_pallas.1} parent=0 // pred_fallthru
    _
  // Predicated region
  $region10: #{rp_network_pallas.1} parent=0 // pred_check
    _
  $region11: #{rp_network_pallas.1} parent=0 // pred_check_branch
    %17 = sbr.rel (0) target = $region13
  $region12: #{rp_network_pallas.1} parent=0 // pred_region
    _
  $region13: #{rp_network_pallas.1} parent=0 // pred_fallthru
    _
  // Predicated region
  $region14: #{rp_network_pallas.1} parent=0 // pred_check
    _
  $region15: #{rp_network_pallas.1} parent=0 // pred_check_branch
    %19 = sbr.rel (0) target = $region17
  $region16: #{rp_network_pallas.1} parent=0 // pred_region
    _
  $region17: #{rp_network_pallas.1} parent=0 // pred_fallthru
    _
  // Predicated region
  $region18: #{rp_network_pallas.1} parent=0 // pred_check
    _
  $region19: #{rp_network_pallas.1} parent=0 // pred_check_branch
    %21 = sbr.rel (0) target = $region21
  $region20: #{rp_network_pallas.1} parent=0 // pred_region
    _
  $region21: #{rp_network_pallas.1} parent=0 // pred_fallthru
    _
  // Predicated region
  $region22: #{rp_network_pallas.1} parent=0 // pred_check
    _
  $region23: #{rp_network_pallas.1} parent=0 // pred_check_branch
    %23 = sbr.rel (0) target = $region25
  $region24: #{rp_network_pallas.1} parent=0 // pred_region
    _
  $region25: #{rp_network_pallas.1} parent=0 // pred_fallthru
    _
  // Predicated region
  $region26: #{rp_network_pallas.1} parent=0 // pred_check
    _
  $region27: #{rp_network_pallas.1} parent=0 // pred_check_branch
    %25 = sbr.rel (0) target = $region29
  $region28: #{rp_network_pallas.1} parent=0 // pred_region
    _
  $region29: #{rp_network_pallas.1} parent=0 // pred_fallthru
    _
  %v28 = vld [vmem:[%s0] sm:$0xf]
  %v29 = vld [vmem:[%s0 + $0x4] sm:$0xf]
  %v30 = vld [vmem:[%s0 + $0x8] sm:$0xf]
  %v31 = vld [vmem:[%s0 + $0xc] sm:$0xf]
  %v32 = vld [vmem:[%s0 + $0x10] sm:$0xf]
  %v33 = vld [vmem:[%s0 + $0x14] sm:$0xf]
  %v34 = vld [vmem:[%s0 + $0x18] sm:$0xf]
  %v35 = vld [vmem:[%s0 + $0x1c] sm:$0xf]
  %v36 = vld [vmem:[%s0 + $0x20] sm:$0xf]
  %v37 = vld [vmem:[%s0 + $0x24] sm:$0xf]
  %v38 = vld [vmem:[%s0 + $0x28] sm:$0xf]
  %v39 = vld [vmem:[%s0 + $0x2c] sm:$0xf]
  %v40 = vld [vmem:[%s0 + $0x30] sm:$0xf]
  %v41 = vld [vmem:[%s0 + $0x34] sm:$0xf]
  %v42 = vld [vmem:[%s0 + $0x38] sm:$0xf]
  %v43 = vld [vmem:[%s0 + $0x3c] sm:$0xf]
  %v44 = vld [vmem:[%s1] sm:$0xf]
  %v45 = vld [vmem:[%s1 + $0x4] sm:$0xf]
  %v46 = vld [vmem:[%s1 + $0x8] sm:$0xf]
  %v47 = vld [vmem:[%s1 + $0xc] sm:$0xf]
  %v48 = vld [vmem:[%s1 + $0x10] sm:$0xf]
  %v49 = vld [vmem:[%s1 + $0x14] sm:$0xf]
  %v50 = vld [vmem:[%s1 + $0x18] sm:$0xf]
  %v51 = vld [vmem:[%s1 + $0x1c] sm:$0xf]
  %v52 = vld [vmem:[%s2] sm:$0xff]
  %v53 = vld [vmem:[%s2 + $0x8] sm:$0xff]
  %v54 = vld [vmem:[%s2 + $0x10] sm:$0xff]
  %v55 = vld [vmem:[%s2 + $0x18] sm:$0xff]
  %v56 = vld [vmem:[%s2 + $0x20] sm:$0xff]
  %v57 = vld [vmem:[%s2 + $0x28] sm:$0xff]
  %v58 = vld [vmem:[%s2 + $0x30] sm:$0xff]
  %v59 = vld [vmem:[%s2 + $0x38] sm:$0xff]
  %61 = vset.pattern.permute.xlu0 0
  %62 = vperm.xlu0 %61, %v52
  %v63 = vpop.permute.xlu0 %62
  %66 = vset.pattern.permute.xlu0 0
  %67 = vperm.xlu0 %66, %v53
  %v68 = vpop.permute.xlu0 %67
  %71 = vset.pattern.permute.xlu0 0
  %72 = vperm.xlu0 %71, %v54
  %v73 = vpop.permute.xlu0 %72
  %76 = vset.pattern.permute.xlu0 0
  %77 = vperm.xlu0 %76, %v55
  %v78 = vpop.permute.xlu0 %77
  %81 = vset.pattern.permute.xlu0 0
  %82 = vperm.xlu0 %81, %v56
  %v83 = vpop.permute.xlu0 %82
  %86 = vset.pattern.permute.xlu0 0
  %87 = vperm.xlu0 %86, %v57
  %v88 = vpop.permute.xlu0 %87
  %91 = vset.pattern.permute.xlu0 0
  %92 = vperm.xlu0 %91, %v58
  %v93 = vpop.permute.xlu0 %92
  %96 = vset.pattern.permute.xlu0 0
  %97 = vperm.xlu0 %96, %v59
  %v98 = vpop.permute.xlu0 %97
  %v108 = vunpack.c.l.b16 %v44
  %v109 = vunpack.c.l.b16 %v45
  %v110 = vunpack.c.l.b16 %v46
  %v111 = vunpack.c.l.b16 %v47
  %v112 = vunpack.c.l.b16 %v48
  %v113 = vunpack.c.l.b16 %v49
  %v114 = vunpack.c.l.b16 %v50
  %v115 = vunpack.c.l.b16 %v51
  %v116 = vpack.c.b16 %v109, %v108
  %v117 = vpack.c.b16 %v111, %v110
  %v118 = vpack.c.b16 %v113, %v112
  %v119 = vpack.c.b16 %v115, %v114
  %v140 = vunpack.c.l.b16 %v28
  %v141 = vunpack.c.l.b16 %v29
  %v142 = vunpack.c.l.b16 %v30
  %v143 = vunpack.c.l.b16 %v31
  %v144 = vunpack.c.l.b16 %v32
  %v145 = vunpack.c.l.b16 %v33
  %v146 = vunpack.c.l.b16 %v34
  %v147 = vunpack.c.l.b16 %v35
  %v148 = vunpack.c.l.b16 %v36
  %v149 = vunpack.c.l.b16 %v37
  %v150 = vunpack.c.l.b16 %v38
  %v151 = vunpack.c.l.b16 %v39
  %v152 = vunpack.c.l.b16 %v40
  %v153 = vunpack.c.l.b16 %v41
  %v154 = vunpack.c.l.b16 %v42
  %v155 = vunpack.c.l.b16 %v43
  %v156 = vpack.c.b16 %v141, %v140
  %v157 = vpack.c.b16 %v143, %v142
  %v158 = vpack.c.b16 %v145, %v144
  %v159 = vpack.c.b16 %v147, %v146
  %v160 = vpack.c.b16 %v149, %v148
  %v161 = vpack.c.b16 %v151, %v150
  %v162 = vpack.c.b16 %v153, %v152
  %v163 = vpack.c.b16 %v155, %v154
  %172 = vmatpush.bf16.msra.mxu0 %v163
  %173 = vmatpush.bf16.msra.mxu0 %v162
  %174 = vmatpush.bf16.msra.mxu0 %v161
  %175 = vmatpush.bf16.msra.mxu0 %v160
  %176 = vmatpush.bf16.msra.mxu0 %v159
  %177 = vmatpush.bf16.msra.mxu0 %v158
  %178 = vmatpush.bf16.msra.mxu0 %v157
  %179 = vmatpush.bf16.msra.mxu0 %v156
  %180 = vmatmul.bf16.gmra.mxu0 %v116
  %v181 = vpop.f32.mrf.mxu0
  %v182 = vadd.f32 %v63, %v181
  %v183 = vpop.f32.mrf.mxu0
  %v184 = vadd.f32 %v68, %v183
  %185 = vmatmul.bf16.gmra.mxu0 %v117
  %v186 = vpop.f32.mrf.mxu0
  %v187 = vadd.f32 %v73, %v186
  %v188 = vpop.f32.mrf.mxu0
  %v189 = vadd.f32 %v78, %v188
  %190 = vmatmul.bf16.gmra.mxu0 %v118
  %v191 = vpop.f32.mrf.mxu0
  %v192 = vadd.f32 %v83, %v191
  %v193 = vpop.f32.mrf.mxu0
  %v194 = vadd.f32 %v88, %v193
  %195 = vmatmul.bf16.gmra.mxu0 %v119
  %v196 = vpop.f32.mrf.mxu0
  %v197 = vadd.f32 %v93, %v196
  %v198 = vpop.f32.mrf.mxu0
  %v199 = vadd.f32 %v98, %v198
  %200 = vdwg.mxu0
  %v201 = vmax.f32 %v182, 0.0
  %v202 = vmax.f32 %v184, 0.0
  %v203 = vmax.f32 %v187, 0.0
  %v204 = vmax.f32 %v189, 0.0
  %v205 = vmax.f32 %v192, 0.0
  %v206 = vmax.f32 %v194, 0.0
  %v207 = vmax.f32 %v197, 0.0
  %v208 = vmax.f32 %v199, 0.0
  %v209 = vld [vmem:[%s3] sm:$0xf]
  %v210 = vld [vmem:[%s3 + $0x4] sm:$0xf]
  %v211 = vld [vmem:[%s3 + $0x8] sm:$0xf]
  %v212 = vld [vmem:[%s3 + $0xc] sm:$0xf]
  %v213 = vpack.c.bf16 %v202, %v201
  %v214 = vpack.c.bf16 %v204, %v203
  %v215 = vpack.c.bf16 %v206, %v205
  %v216 = vpack.c.bf16 %v208, %v207
  %v217 = vld [vmem:[%s4] sm:$0xff]
  %v218 = vld [vmem:[%s4 + $0x8] sm:$0xff]
  %v219 = vld [vmem:[%s4 + $0x10] sm:$0xff]
  %v220 = vld [vmem:[%s4 + $0x18] sm:$0xff]
  %222 = vset.pattern.permute.xlu0 0
  %223 = vperm.xlu0 %222, %v217
  %v224 = vpop.permute.xlu0 %223
  %227 = vset.pattern.permute.xlu0 0
  %228 = vperm.xlu0 %227, %v218
  %v229 = vpop.permute.xlu0 %228
  %232 = vset.pattern.permute.xlu0 0
  %233 = vperm.xlu0 %232, %v219
  %v234 = vpop.permute.xlu0 %233
  %237 = vset.pattern.permute.xlu0 0
  %238 = vperm.xlu0 %237, %v220
  %v239 = vpop.permute.xlu0 %238
  %v245 = vunpack.c.l.b16 %v209
  %v246 = vunpack.c.l.b16 %v210
  %v247 = vunpack.c.l.b16 %v211
  %v248 = vunpack.c.l.b16 %v212
  %v249 = vpack.c.b16 %v246, %v245
  %v250 = vpack.c.b16 %v248, %v247
  %vm251 = vcmask 523264
  %v253 = vsel %vm251, %v249, 0
  %v256 = vsel %vm251, %v250, 0
  %258 = vmatpush.bf16.msra.mxu0 0
  %259 = vmatpush.bf16.msra.mxu0 0
  %260 = vmatpush.bf16.msra.mxu0 0
  %261 = vmatpush.bf16.msra.mxu0 0
  %262 = vmatpush.bf16.msra.mxu0 %v216
  %263 = vmatpush.bf16.msra.mxu0 %v215
  %264 = vmatpush.bf16.msra.mxu0 %v214
  %265 = vmatpush.bf16.msra.mxu0 %v213
  %266 = vmatmul.bf16.gmra.mxu0 %v253
  %v267 = vpop.f32.mrf.mxu0
  %v268 = vadd.f32 %v224, %v267
  %v269 = vpop.f32.mrf.mxu0
  %v270 = vadd.f32 %v229, %v269
  %271 = vmatmul.bf16.gmra.mxu0 %v256
  %v272 = vpop.f32.mrf.mxu0
  %v273 = vadd.f32 %v234, %v272
  %v274 = vpop.f32.mrf.mxu0
  %v275 = vadd.f32 %v239, %v274
  %276 = vdwg.mxu0
  %v277 = vmax.f32 %v268, 0.0
  %v278 = vmax.f32 %v270, 0.0
  %v279 = vmax.f32 %v273, 0.0
  %v280 = vmax.f32 %v275, 0.0
  %v281 = vpack.c.bf16 %v278, %v277
  %v282 = vpack.c.bf16 %v280, %v279
  %v283 = vld [vmem:[%s5] sm:$0xf]
  %v284 = vld [vmem:[%s5 + $0x4] sm:$0xf]
  %v285 = vld [vmem:[%s5 + $0x8] sm:$0xf]
  %v286 = vld [vmem:[%s5 + $0xc] sm:$0xf]
  %v287 = vld [vmem:[%s5 + $0x10] sm:$0xf]
  %v288 = vld [vmem:[%s5 + $0x14] sm:$0xf]
  %v289 = vld [vmem:[%s5 + $0x18] sm:$0xf]
  %v290 = vld [vmem:[%s5 + $0x1c] sm:$0xf]
  %v291 = vld [vmem:[%s6] sm:$0xff]
  %v292 = vld [vmem:[%s6 + $0x8] sm:$0xff]
  %v293 = vld [vmem:[%s6 + $0x10] sm:$0xff]
  %v294 = vld [vmem:[%s6 + $0x18] sm:$0xff]
  %v295 = vld [vmem:[%s6 + $0x20] sm:$0xff]
  %v296 = vld [vmem:[%s6 + $0x28] sm:$0xff]
  %v297 = vld [vmem:[%s6 + $0x30] sm:$0xff]
  %v298 = vld [vmem:[%s6 + $0x38] sm:$0xff]
  %300 = vset.pattern.permute.xlu0 0
  %301 = vperm.xlu0 %300, %v291
  %v302 = vpop.permute.xlu0 %301
  %305 = vset.pattern.permute.xlu0 0
  %306 = vperm.xlu0 %305, %v292
  %v307 = vpop.permute.xlu0 %306
  %310 = vset.pattern.permute.xlu0 0
  %311 = vperm.xlu0 %310, %v293
  %v312 = vpop.permute.xlu0 %311
  %315 = vset.pattern.permute.xlu0 0
  %316 = vperm.xlu0 %315, %v294
  %v317 = vpop.permute.xlu0 %316
  %320 = vset.pattern.permute.xlu0 0
  %321 = vperm.xlu0 %320, %v295
  %v322 = vpop.permute.xlu0 %321
  %325 = vset.pattern.permute.xlu0 0
  %326 = vperm.xlu0 %325, %v296
  %v327 = vpop.permute.xlu0 %326
  %330 = vset.pattern.permute.xlu0 0
  %331 = vperm.xlu0 %330, %v297
  %v332 = vpop.permute.xlu0 %331
  %335 = vset.pattern.permute.xlu0 0
  %336 = vperm.xlu0 %335, %v298
  %v337 = vpop.permute.xlu0 %336
  %v347 = vunpack.c.l.b16 %v283
  %v348 = vunpack.c.l.b16 %v284
  %v349 = vunpack.c.l.b16 %v285
  %v350 = vunpack.c.l.b16 %v286
  %v351 = vunpack.c.l.b16 %v287
  %v352 = vunpack.c.l.b16 %v288
  %v353 = vunpack.c.l.b16 %v289
  %v354 = vunpack.c.l.b16 %v290
  %v355 = vpack.c.b16 %v348, %v347
  %v356 = vpack.c.b16 %v350, %v349
  %v357 = vpack.c.b16 %v352, %v351
  %v358 = vpack.c.b16 %v354, %v353
  %vm359 = vcmask 261120
  %v361 = vsel %vm359, %v355, 0
  %v364 = vsel %vm359, %v356, 0
  %v367 = vsel %vm359, %v357, 0
  %v370 = vsel %vm359, %v358, 0
  %372 = vmatpush.bf16.msra.mxu0 0
  %373 = vmatpush.bf16.msra.mxu0 0
  %374 = vmatpush.bf16.msra.mxu0 0
  %375 = vmatpush.bf16.msra.mxu0 0
  %376 = vmatpush.bf16.msra.mxu0 0
  %377 = vmatpush.bf16.msra.mxu0 0
  %378 = vmatpush.bf16.msra.mxu0 %v282
  %379 = vmatpush.bf16.msra.mxu0 %v281
  %380 = vmatmul.bf16.gmra.mxu0 %v361
  %v381 = vpop.f32.mrf.mxu0
  %v382 = vadd.f32 %v302, %v381
  %v383 = vpop.f32.mrf.mxu0
  %v384 = vadd.f32 %v307, %v383
  %385 = vmatmul.bf16.gmra.mxu0 %v364
  %v386 = vpop.f32.mrf.mxu0
  %v387 = vadd.f32 %v312, %v386
  %v388 = vpop.f32.mrf.mxu0
  %v389 = vadd.f32 %v317, %v388
  %390 = vmatmul.bf16.gmra.mxu0 %v367
  %v391 = vpop.f32.mrf.mxu0
  %v392 = vadd.f32 %v322, %v391
  %v393 = vpop.f32.mrf.mxu0
  %v394 = vadd.f32 %v327, %v393
  %395 = vmatmul.bf16.gmra.mxu0 %v370
  %v396 = vpop.f32.mrf.mxu0
  %v397 = vadd.f32 %v332, %v396
  %v398 = vpop.f32.mrf.mxu0
  %v399 = vadd.f32 %v337, %v398
  %400 = vdwg.mxu0
  %v401 = vmul.f32 %v382, %v201
  %v402 = vmul.f32 %v384, %v202
  %v403 = vmul.f32 %v387, %v203
  %v404 = vmul.f32 %v389, %v204
  %v405 = vmul.f32 %v392, %v205
  %v406 = vmul.f32 %v394, %v206
  %v407 = vmul.f32 %v397, %v207
  %v408 = vmul.f32 %v399, %v208
  %v409 = vpack.c.bf16 %v402, %v401
  %v410 = vpack.c.bf16 %v404, %v403
  %v411 = vpack.c.bf16 %v406, %v405
  %v412 = vpack.c.bf16 %v408, %v407
  %v414 = vsel %vm251, 1065369472, 0
  %416 = vmatpush.bf16.msra.mxu0 0
  %417 = vmatpush.bf16.msra.mxu0 0
  %418 = vmatpush.bf16.msra.mxu0 0
  %419 = vmatpush.bf16.msra.mxu0 0
  %420 = vmatpush.bf16.msra.mxu0 %v412
  %421 = vmatpush.bf16.msra.mxu0 %v411
  %422 = vmatpush.bf16.msra.mxu0 %v410
  %423 = vmatpush.bf16.msra.mxu0 %v409
  %424 = vmatmul.bf16.gmra.mxu0 %v414
  %v425 = vpop.f32.mrf.mxu0
  %v426 = vadd.f32 0.0, %v425
  %v427 = vpop.f32.mrf.mxu0
  %428 = vdwg.mxu0
  %v429 = vxor.u32 %v426, 2147483648
  %v430 = vmul.f32 %v429, 1.442695
  %v431 = vpow.pop %v430
  %v432 = vadd.f32 %v431, 1.0
  %v433 = vrcp.pop %v432
  %v434 = vmul.f32 %v432, %v433
  %v435 = vsub.f32 1.0, %v434
  %v436 = vmul.f32 %v433, %v435
  %v437 = vadd.f32 %v433, %v436
  %vm438 = vweird.f32 %v432
  %vm439 = vweird.f32 %v433
  %vm440 = vmor %vm438, %vm439
  %v441 = vsel %vm440, %v433, %v437
  %v442 = vand.u32 2147483647, %v432
  %vm443 = vcmp.eq.f32.partialorder %v442, 8.507059e+37
  %v444 = vand.u32 %v432, 2147483648
  %v445 = vor.u32 1.1754944e-38, %v444
  %v446 = vsel %vm443, %v445, %v441
  %v447 = vmul.f32 1.0, %v446
  %448 = vst [vmem:[%s7] sm:$0x1] %v447
  // Predicated region
  $region30: #{rp_network_pallas.1} parent=0 // pred_check
    _
  $region31: #{rp_network_pallas.1} parent=0 // pred_check_branch
    %450 = sbr.rel (0) target = $region33
  $region32: #{rp_network_pallas.1} parent=0 // pred_region
    _
  $region33: #{rp_network_pallas.1} parent=0 // pred_fallthru
    _
  // Predicated region
  $region34: #{rp_network_pallas.1} parent=0 // pred_check
    _
  $region35: #{rp_network_pallas.1} parent=0 // pred_check_branch
    %452 = sbr.rel (0) target = $region37
  $region36: #{rp_network_pallas.1} parent=0 // pred_region
    _
  $region37: #{rp_network_pallas.1} parent=0 // pred_fallthru
    _

</llo_original>
